<compile_context>
chip_gen: v7x
topology: tpu7x:2x2x1
jax: 0.10.0
libtpu: 0.0.40
codegen_flags: <defaults>
</compile_context>

<pallas_src>
import math

import jax
import jax.numpy as jnp
from jax.experimental import pallas as pl
from jax.experimental.pallas import tpu as pltpu


# ------------------------------- kernel -------------------------------------

def _add_pe_kernel(x_ref, pe_ref, o_ref):
    # x_ref:  (tm, tn) tile of the flattened (B, S*D) activations.
    # pe_ref: (1, tn) tile of the flattened PE row, broadcast over the tm rows.
    o_ref[...] = x_ref[...] + pe_ref[...]


# --------------------------- PE table (buffer) -------------------------------

def make_positional_encoding_table(max_seq_length, d_model, dtype=jnp.float32):
    """Same formula as the PyTorch module's registered buffer `pe`."""
    assert d_model % 2 == 0, "d_model must be even (same as the PyTorch ref)"
    position = jnp.arange(max_seq_length, dtype=jnp.float32)[:, None]
    div_term = jnp.exp(jnp.arange(0, d_model, 2, dtype=jnp.float32)
                       * (-math.log(10000.0) / d_model))
    pe = jnp.zeros((max_seq_length, d_model), jnp.float32)
    pe = pe.at[:, 0::2].set(jnp.sin(position * div_term))
    pe = pe.at[:, 1::2].set(jnp.cos(position * div_term))
    return pe.astype(dtype)


# ------------------------------ tiling plan ----------------------------------

def _round_up(x, m):
    return ((x + m - 1) // m) * m


def _vmem_budget_bytes():
    # Generation-aware: v5e/v6e have 128 MiB VMEM, v7x only 64 MiB (32 MiB
    # default scoped). Pipelined buffers (double-buffered x + out + pe row)
    # are capped at min(VMEM/8, 8 MiB): ~2 MiB blocks already reach ~85% of
    # the HBM roofline on a tiled f32 add, and this fits under every chip's
    # default scoped-VMEM limit with room for internal scratch.
    try:
        cap = pltpu.get_tpu_info().vmem_capacity_bytes
    except Exception:
        cap = 64 << 20  # most restrictive known generation (v7x)
    return min(cap // 8, 8 << 20)


def _plan_tiles(B, N, itemsize, budget):
    """Pick (tm, tn) for the flattened (B, N) elementwise add.

    Live pipeline buffers: 2x x-block + 2x out-block + 2x pe-row.
    """
    sub = 16 if itemsize == 2 else 8          # sublane tile for the dtype

    def pipeline_bytes(tm, tn):
        return (4 * tm * tn + 2 * tn) * itemsize

    # Lane axis: prefer tn == N (one contiguous HBM region per block, PE row
    # DMA'd exactly once per lane tile). Only tile the lane axis (multiple of
    # 128) if even one sublane-unit of full rows blows the budget.
    if pipeline_bytes(sub, N) <= budget:
        tn = N
    else:
        tn = (budget // (itemsize * (4 * sub + 2))) // 128 * 128
        tn = max(128, min(tn, _round_up(N, 128)))

    # Row axis: largest sublane-aligned tm that keeps the pipeline in budget.
    tm = max(sub, ((budget // itemsize - 2 * tn) // (4 * tn)) // sub * sub)
    tm = min(tm, _round_up(B, sub))

    # v7x megacore: ensure at least one 'parallel' grid axis has >= 2 steps so
    # both TensorCores get work (measured ~neutral on single-TC v5e/v6e).
    if pl.cdiv(B, tm) * pl.cdiv(N, tn) < 2:
        if B > sub:
            tm = _round_up(pl.cdiv(B, 2), sub)
        elif tn == N and N > 128:
            tn = _round_up(pl.cdiv(N, 2), 128)
    return tm, tn


# ------------------------------ wrapper --------------------------------------

def positional_encoding_forward(x, pe_table, *, min_pallas_bytes=1 << 20,
                                force_pallas=False):
    """x: (B, S, D); pe_table: (max_seq_length, D). Returns x + pe_table[:S].

    Dropout is identity (inference semantics, matching the PyTorch module in
    eval mode). The add is done in x's dtype (bf16 stays bf16).
    """
    B, S, D = x.shape
    assert pe_table.shape[1] == D and pe_table.shape[0] >= S
    pe = pe_table[:S].astype(x.dtype)

    itemsize = jnp.dtype(x.dtype).itemsize
    if not force_pallas and B * S * D * itemsize < min_pallas_bytes:
        # KB-scale inputs: a standalone kernel launch (+ ~0.35 us per grid
        # step) dwarfs the useful traffic; let XLA fuse the plain add into
        # neighbouring ops instead.
        return x + pe[None]

    # Flatten (S, D) into one lane axis: lane-dense stores whenever S*D is a
    # multiple of 128, and each x/out block is one contiguous HBM region.
    N = S * D
    x2 = x.reshape(B, N)
    pe2 = pe.reshape(1, N)

    budget = _vmem_budget_bytes()
    tm, tn = _plan_tiles(B, N, itemsize, budget)
    # Lane tiles OUTER, batch-row tiles INNER: the PE block index (0, j) is
    # constant across the inner axis, so it is not re-DMA'd per row tile.
    # cdiv grid => ragged edge blocks are fine for an elementwise add (OOB
    # reads are padded, OOB writes masked).
    grid = (pl.cdiv(N, tn), pl.cdiv(B, tm))

    pipeline_bytes = (4 * tm * tn + 2 * tn) * itemsize

    out = pl.pallas_call(
        _add_pe_kernel,
        out_shape=jax.ShapeDtypeStruct((B, N), x.dtype),
        grid=grid,
        in_specs=[
            pl.BlockSpec((tm, tn), lambda j, i: (i, j)),   # x
            pl.BlockSpec((1, tn), lambda j, i: (0, j)),    # pe (row broadcast)
        ],
        out_specs=pl.BlockSpec((tm, tn), lambda j, i: (i, j)),
        # Alias x -> out: no second B*S*D HBM buffer. Each output block only
        # depends on its own input block, so in-place writeback is hazard-free.
        input_output_aliases={0: 0},
        compiler_params=pltpu.CompilerParams(
            dimension_semantics=("parallel", "parallel"),
            # Sized from the actual pipelined buffers (+ generous headroom),
            # clamped to 32 MiB so it is safe on every generation.
            vmem_limit_bytes=min(32 << 20,
                                 max(16 << 20, 2 * pipeline_bytes)),
        ),
    )(x2, pe2)

    # TODO(synk): nn.Dropout in training mode is not implemented (eval/identity
    # semantics only); a training path would use pltpu.prng_seed +
    # pltpu.stateful_bernoulli inside the kernel.
    return out.reshape(B, S, D)


# -------------------------------- main ---------------------------------------

if __name__ == "__main__":
    # Shapes consistent with the surrounding model config:
    # d_model=32, max_seq_length=16, batch=2, seq=8, dropout=0.1 (identity).
    d_model, max_seq_length = 32, 16
    B, S = 2, 8

    key = jax.random.PRNGKey(0)
    x = jax.random.normal(key, (B, S, d_model), jnp.float32)
    pe = make_positional_encoding_table(max_seq_length, d_model)
    ref = x + pe[:S][None]

    # 1) Pallas path forced at the small demo shape (exercises the kernel).
    y = jax.block_until_ready(
        positional_encoding_forward(x, pe, force_pallas=True))
    assert y.shape == (B, S, d_model), y.shape
    assert jnp.all(jnp.isfinite(y))
    assert jnp.allclose(y, ref, atol=1e-6), float(jnp.max(jnp.abs(y - ref)))

    # 2) Small-input dispatch: plain fused add below the size threshold.
    y_small = jax.block_until_ready(positional_encoding_forward(x, pe))
    assert jnp.allclose(y_small, ref, atol=1e-6)

    # 3) Larger f32 shape: full-row (tn = N) contiguous blocks, >=2 row tiles.
    B2, S2, D2 = 32, 128, 256
    x2 = jax.random.normal(jax.random.PRNGKey(1), (B2, S2, D2), jnp.float32)
    pe2 = make_positional_encoding_table(S2, D2)
    y2 = jax.block_until_ready(positional_encoding_forward(x2, pe2))
    assert jnp.allclose(y2, x2 + pe2[None], atol=1e-5)

    # 4) bf16 path (half the HBM traffic; (16,128) sublane tile respected).
    x3 = jax.random.normal(jax.random.PRNGKey(2), (32, 128, 128), jnp.bfloat16)
    pe3 = make_positional_encoding_table(128, 128, dtype=jnp.bfloat16)
    y3 = jax.block_until_ready(positional_encoding_forward(x3, pe3))
    assert jnp.allclose(y3.astype(jnp.float32),
                        (x3 + pe3[None]).astype(jnp.float32), atol=1e-2)

    # 5) Ragged rows (B not a multiple of 8): cdiv grid with masked edge block.
    B4, S4, D4 = 10, 16, 96
    x4 = jax.random.normal(jax.random.PRNGKey(3), (B4, S4, D4), jnp.float32)
    pe4 = make_positional_encoding_table(S4, D4)
    y4 = jax.block_until_ready(
        positional_encoding_forward(x4, pe4, force_pallas=True))
    assert jnp.allclose(y4, x4 + pe4[None], atol=1e-6)

    print("KERNEL_OK")
</pallas_src>

<mosaic_0001>
module attributes {stable_mosaic.version = 11 : i64} {
  func.func @_add_pe_kernel(%arg0: i32, %arg1: i32, %arg2: memref<8x128xf32, #tpu.memory_space<vmem>>, %arg3: memref<1x128xf32, #tpu.memory_space<vmem>>, %arg4: memref<8x128xf32, #tpu.memory_space<vmem>>) attributes {dimension_semantics = [#tpu.dimension_semantics<parallel>, #tpu.dimension_semantics<parallel>], iteration_bounds = array<i64: 2, 1>, scalar_prefetch = 0 : i64, scratch_operands = 0 : i64, tpu.core_type = #tpu.core_type<tc>, window_params = [{transform_indices = @transform_0, window_bounds = array<i64: 8, 128>}, {transform_indices = @transform_1, window_bounds = array<i64: 1, 128>}, {transform_indices = @transform_2, window_bounds = array<i64: 8, 128>}]} {
    %c0 = arith.constant 0 : index
    %c0_0 = arith.constant 0 : index
    %0 = vector.load %arg2[%c0, %c0_0] : memref<8x128xf32, #tpu.memory_space<vmem>>, vector<8x128xf32>
    %c0_1 = arith.constant 0 : index
    %c0_2 = arith.constant 0 : index
    %1 = vector.load %arg3[%c0_1, %c0_2] : memref<1x128xf32, #tpu.memory_space<vmem>>, vector<1x128xf32>
    %2 = vector.broadcast %1 : vector<1x128xf32> to vector<8x128xf32>
    %3 = arith.addf %0, %2 : vector<8x128xf32>
    %c0_3 = arith.constant 0 : index
    %c0_4 = arith.constant 0 : index
    %4 = vector.load %arg4[%c0_3, %c0_4] : memref<8x128xf32, #tpu.memory_space<vmem>>, vector<8x128xf32>
    tpu.vector_store %arg4[%c0_3, %c0_4], %3 {strides = array<i32>} : memref<8x128xf32, #tpu.memory_space<vmem>>, vector<8x128xf32>,
    return
  }
  func.func @transform_0(%arg0: i32, %arg1: i32) -> (i32, i32) {
    %c0_i32 = arith.constant 0 : i32
    return %arg1, %arg0 : i32, i32
  }
  func.func @transform_1(%arg0: i32, %arg1: i32) -> (i32, i32) {
    %c0_i32 = arith.constant 0 : i32
    %c0_i32_0 = arith.constant 0 : i32
    return %c0_i32, %arg0 : i32, i32
  }
  func.func @transform_2(%arg0: i32, %arg1: i32) -> (i32, i32) {
    %c0_i32 = arith.constant 0 : i32
    return %arg1, %arg0 : i32, i32
  }
}

</mosaic_0001>

<llo_original>
// kernel: tpu_custom_call.1
$region0: #{tpu_custom_call.1}
  #allocation0 [shape = 'u32[]', space=smem, size = 0x4, offset = 0x4, fixed_abs, tag = 'smem constant byte address 0x4 - core index']
  #allocation1 [shape = 'u32[144,128]{1,0:T(1,128)}', space=vmem, size = 0x12000, scoped, tag = 'internal scratch']
  %s0 = inlined_call_operand.hbm [shape: f32[2,256], index: 0, kind: input, shape index: {}, may-alias: {0,2}]
  %s1 = inlined_call_operand.vmem [shape: f32[1,256], index: 1, kind: input, shape index: {}]
  %s2 = inlined_call_operand.hbm [shape: f32[2,256], index: 2, kind: output, shape index: {}, may-alias: {0,2}]
  %s3 = sld [smem:[#allocation0]]
  $region45: #{tpu_custom_call.1} parent=0
    _
  %s5 = ssub.s32 1, %s3
  %s6 = scalar_select 0, %s5, %s3
  $region1: #{tpu_custom_call.1} parent=0
    #allocation2 [shape = 'u8[8192]{0}', space=vmem, size = 0x2000, scoped, tag = 'input window, operand 0']
    #allocation3 [shape = 's32[2]{0}', space=sflag, size = 0x8, scoped, tag = 'scoped memory for tpu_custom_call.1']
    #allocation4 [shape = 's32[2]{0}', space=sflag, size = 0x8, scoped, tag = 'scoped memory for tpu_custom_call.1']
    #allocation5 [shape = 'u8[8192]{0}', space=vmem, size = 0x2000, scoped, tag = 'output window, operand 0']
    %7 = vsyncpa [#allocation3], 0
    %s8 = scalar_lea.sflag [#allocation3], 1
    %9 = vsyncpa %s8, 0
    %10 = vsyncpa [#allocation4], 0
    %s11 = scalar_lea.sflag [#allocation4], 1
    %12 = vsyncpa %s11, 0
    loop: start=0, step=1, limit=4
    $region2: #{tpu_custom_call.1} parent=1 // loop_pre_header
      _
    $region3: #{tpu_custom_call.1} parent=1 // loop_header
      %s14 = sphi 0, %s18
      %p15 = scmp.ge.s32.totalorder %s14, 4
      %s21 = sphi 0, %s33
      %s22 = sphi 0, %s29
      %s23 = sphi 0, %s21
      %s24 = sphi 0, %s22
      %s25 = sphi 0, %s23
      %s26 = sphi 0, %s24
      %s38 = sphi 0, %s40
      %s41 = sphi 0, %s38
      %s42 = sphi 0, %s41
      %s58 = sphi 0, %s42
      %s64 = sphi 0, %s66
      %s67 = sphi 0, %s64
      %s68 = sphi 0, %s67
      %s84 = sphi 0, %s68
      %s92 = sphi 0, %s94
      %s95 = sphi 0, %s92
      %s96 = sphi 0, %s95
      %s112 = sphi 0, %s96
    $region4: #{tpu_custom_call.1} parent=1 // loop_header_branch
      %17 = sbr.rel (%p15) target = $region8
    $region5: #{tpu_custom_call.1} parent=1 // loop_body
      %s19 = ssub.s32 %s14, 1
      %s20 = ssub.s32 %s14, 2
      %s27 = sadd.s32 1, %s22
      %p28 = scmp.ge.s32.totalorder %s27, 1
      %s29 = scalar_select %p28, 0, %s27
      %s30 = sadd.s32 1, %s21
      %s31 = scalar_select %p28, %s30, %s21
      %p32 = scmp.ge.s32.totalorder %s31, 2
      %s33 = scalar_select %p32, 0, %s31
      %s34 = ssub.s32 %s22, %s29
      %s35 = ssub.s32 %s21, %s33
      %s36 = sor.u32 %s34, %s35
      %p37 = scmp.eq.s32.totalorder %s36, 0
      %s39 = sadd.s32 %s38, 1
      %s40 = scalar_select %p37, %s38, %s39
      %p43 = pneg %p37
      %p44 = scmp.eq.s32.totalorder %s14, 1
      %p45 = por %p43, %p44
      %p46 = scmp.ne.s32.totalorder %s38, %s41
      %p47 = scmp.eq.s32.totalorder %s14, 0
      %p48 = por %p46, %p47
      %p49 = scmp.ne.s32.totalorder %s38, %s41
      %p50 = scmp.eq.s32.totalorder %s19, 1
      %p51 = por %p49, %p50
      %p52 = scmp.ne.s32.totalorder %s41, %s42
      %p53 = scmp.eq.s32.totalorder %s19, 0
      %p54 = por %p52, %p53
      %p55 = scmp.ne.s32.totalorder %s41, %s42
      %p56 = scmp.eq.s32.totalorder %s20, 1
      %p57 = por %p55, %p56
      %p59 = scmp.ne.s32.totalorder %s42, %s58
      %p60 = scmp.eq.s32.totalorder %s20, 0
      %p61 = por %p59, %p60
      %s62 = ssub.s32 %s21, %s33
      %p63 = scmp.eq.s32.totalorder %s62, 0
      %s65 = sadd.s32 %s64, 1
      %s66 = scalar_select %p63, %s64, %s65
      %p69 = pneg %p63
      %p70 = scmp.eq.s32.totalorder %s14, 1
      %p71 = por %p69, %p70
      %p72 = scmp.ne.s32.totalorder %s64, %s67
      %p73 = scmp.eq.s32.totalorder %s14, 0
      %p74 = por %p72, %p73
      %p75 = scmp.ne.s32.totalorder %s64, %s67
      %p76 = scmp.eq.s32.totalorder %s19, 1
      %p77 = por %p75, %p76
      %p78 = scmp.ne.s32.totalorder %s67, %s68
      %p79 = scmp.eq.s32.totalorder %s19, 0
      %p80 = por %p78, %p79
      %p81 = scmp.ne.s32.totalorder %s67, %s68
      %p82 = scmp.eq.s32.totalorder %s20, 1
      %p83 = por %p81, %p82
      %p85 = scmp.ne.s32.totalorder %s68, %s84
      %p86 = scmp.eq.s32.totalorder %s20, 0
      %p87 = por %p85, %p86
      %s88 = ssub.s32 %s22, %s29
      %s89 = ssub.s32 %s21, %s33
      %s90 = sor.u32 %s88, %s89
      %p91 = scmp.eq.s32.totalorder %s90, 0
      %s93 = sadd.s32 %s92, 1
      %s94 = scalar_select %p91, %s92, %s93
      %p97 = pneg %p91
      %p98 = scmp.eq.s32.totalorder %s14, 1
      %p99 = por %p97, %p98
      %p100 = scmp.ne.s32.totalorder %s92, %s95
      %p101 = scmp.eq.s32.totalorder %s14, 0
      %p102 = por %p100, %p101
      %p103 = scmp.ne.s32.totalorder %s92, %s95
      %p104 = scmp.eq.s32.totalorder %s19, 1
      %p105 = por %p103, %p104
      %p106 = scmp.ne.s32.totalorder %s95, %s96
      %p107 = scmp.eq.s32.totalorder %s19, 0
      %p108 = por %p106, %p107
      %p109 = scmp.ne.s32.totalorder %s95, %s96
      %p110 = scmp.eq.s32.totalorder %s20, 1
      %p111 = por %p109, %p110
      %p113 = scmp.ne.s32.totalorder %s96, %s112
      %p114 = scmp.eq.s32.totalorder %s20, 0
      %p115 = por %p113, %p114
      %p116 = scmp.le.s32.totalorder 1, %s14
      %p117 = scmp.lt.s32.totalorder %s14, 3
      %p118 = pnand %p116, %p117
      %p119 = pneg %p118
      // Predicated region
      $region9: #{tpu_custom_call.1} parent=5 // pred_check
        _
      $region10: #{tpu_custom_call.1} parent=5 // pred_check_branch
        %121 = sbr.rel (%p118) target = $region12
      $region11: #{tpu_custom_call.1} parent=5 // pred_region
        %s122 = ssub.s32 %s14, 1
      $region12: #{tpu_custom_call.1} parent=5 // pred_fallthru
        _
      %p123 = scmp.lt.s32.totalorder %s14, 2
      // Predicated region
      $region13: #{tpu_custom_call.1} parent=5 // pred_check
        %p124 = pneg %p123
      $region14: #{tpu_custom_call.1} parent=5 // pred_check_branch
        %126 = sbr.rel (%p124) target = $region16
      $region15: #{tpu_custom_call.1} parent=5 // pred_region
        // Predicated region
        $region17: #{tpu_custom_call.1} parent=15 // pred_check
          %p127 = pneg %p48
        $region18: #{tpu_custom_call.1} parent=15 // pred_check_branch
          %129 = sbr.rel (%p127) target = $region20
        $region19: #{tpu_custom_call.1} parent=15 // pred_region
          %s130 = sand.u32 %s38, 1
          %s131 = scalar_lea.sflag [#allocation3], %s130
          %s132 = sand.u32 %s38, 1
          %s133 = smul.addr %s132, 8
          %s134 = scalar_lea.vmem [#allocation2], %s133
          %s135 = smul.u32 4, %s22
          %s136 = ssub.s32 1, %s135
          %s137 = smul.u32 32, %s136
          %s139 = ssub.s32 128, %s137
          %140 = vsyncadd %s131, %s139
          %p141 = scmp.ne.s32.totalorder 0, %s137
          %s142 = smul.addr %s135, 2
          %s143 = sadd.s32 %s21, %s142
          %s144 = smul.addr %s143, 32
          %s145 = scalar_lea.hbm %s0, %s144
          %s146 = smul.u32 2, %s136
          %s147 = sshll.u32 %s134, 4
          %s148 = int_to_ptr.vmem [resolvable:$true] %s147
          %s149 = sshll.u32 %s146, 4
          %153 = dma.hbm_to_vmem [thread:$0]  (%p141), %s145, %s149, %s148, %s131, 64, 32, 2
        $region20: #{tpu_custom_call.1} parent=15 // pred_fallthru
          _
        // Predicated region
        $region21: #{tpu_custom_call.1} parent=15 // pred_check
          %p154 = pneg %p74
        $region22: #{tpu_custom_call.1} parent=15 // pred_check_branch
          %156 = sbr.rel (%p154) target = $region24
        $region23: #{tpu_custom_call.1} parent=15 // pred_region
          %p157 = scmp.lt.s32.totalorder %s21, 1
          %s158 = scalar_select %p157, %s21, 1
          %s159 = scalar_lea.vmem %s1, %s158
        $region24: #{tpu_custom_call.1} parent=15 // pred_fallthru
          _
      $region16: #{tpu_custom_call.1} parent=5 // pred_fallthru
        _
      %p160 = scmp.le.s32.totalorder 1, %s14
      %p161 = scmp.lt.s32.totalorder %s14, 3
      %p162 = pnand %p160, %p161
      %p163 = pneg %p162
      // Predicated region
      $region25: #{tpu_custom_call.1} parent=5 // pred_check
        _
      $region26: #{tpu_custom_call.1} parent=5 // pred_check_branch
        %165 = sbr.rel (%p162) target = $region28
      $region27: #{tpu_custom_call.1} parent=5 // pred_region
        %s166 = ssub.s32 %s14, 1
        %s167 = sand.u32 %s41, 1
        %s168 = scalar_lea.sflag [#allocation3], %s167
        %s169 = sand.u32 %s41, 1
        %s170 = smul.addr %s169, 8
        %s171 = scalar_lea.vmem [#allocation2], %s170
        // Predicated region
        $region29: #{tpu_custom_call.1} parent=27 // pred_check
          %p172 = pneg %p54
        $region30: #{tpu_custom_call.1} parent=27 // pred_check_branch
          %174 = sbr.rel (%p172) target = $region32
        $region31: #{tpu_custom_call.1} parent=27 // pred_region
          %175 = dma.done %s168, 128
        $region32: #{tpu_custom_call.1} parent=27 // pred_fallthru
          _
        %s176 = sand.u32 %s41, 1
        %s177 = scalar_lea.sflag [#allocation3], %s176
        %s178 = sand.u32 %s41, 1
        %s179 = smul.addr %s178, 8
        %s180 = scalar_lea.vmem [#allocation2], %s179
        %p181 = pneg %p54
        %p182 = pneg %p51
        %p183 = scmp.lt.s32.totalorder %s23, 1
        %s184 = scalar_select %p183, %s23, 1
        %s185 = scalar_lea.vmem %s1, %s184
        %p186 = pneg %p80
        %p187 = pneg %p77
        %p188 = pneg %p108
        %p189 = pneg %p105
        %s190 = sand.u32 %s95, 1
        %s191 = scalar_lea.sflag [#allocation4], %s190
        %s192 = sand.u32 %s95, 1
        %s193 = smul.addr %s192, 8
        %s194 = scalar_lea.vmem [#allocation5], %s193
        %s195 = smul.u32 4, %s24
        %s196 = ssub.s32 1, %s195
        %s197 = smul.u32 32, %s196
        %p198 = scmp.lt.s32.totalorder %s23, 1
        %s199 = scalar_select %p198, %s23, 1
        %s200 = scalar_lea.vmem %s1, %s199
        %s201 = smul.u32 4, %s24
        %s202 = ssub.s32 1, %s201
        %s203 = smul.u32 32, %s202
        %v204 = vld [vmem:[%s171] sm:$0xff]
        %v205 = vld [vmem:[%s200] sm:$0x1]
        %v207 = vlaneseq
        %v208 = vshrl.u32 %v207, 7
        %v209 = vsub.s32 0, %v208
        %v210 = vrot.slane %v205, %v209
        %v212 = vadd.f32 %v204, %v210
        %213 = vst [vmem:[%s194] sm:$0xff] %v212
        %s214 = sand.u32 %s95, 1
        %s215 = scalar_lea.sflag [#allocation4], %s214
        %s216 = sand.u32 %s95, 1
        %s217 = smul.addr %s216, 8
        %s218 = scalar_lea.vmem [#allocation5], %s217
        // Predicated region
        $region33: #{tpu_custom_call.1} parent=27 // pred_check
          %p219 = pneg %p105
        $region34: #{tpu_custom_call.1} parent=27 // pred_check_branch
          %221 = sbr.rel (%p219) target = $region36
        $region35: #{tpu_custom_call.1} parent=27 // pred_region
          %s222 = smul.u32 4, %s24
          %s223 = ssub.s32 1, %s222
          %s224 = smul.u32 32, %s223
          %s226 = ssub.s32 128, %s224
          %227 = vsyncadd %s215, %s226
          %p228 = scmp.ne.s32.totalorder 0, %s224
          %s229 = smul.addr %s222, 2
          %s230 = sadd.s32 %s23, %s229
          %s231 = smul.addr %s230, 32
          %s232 = scalar_lea.hbm %s2, %s231
          %s233 = smul.u32 2, %s223
          %s234 = sshll.u32 %s218, 4
          %s235 = int_to_ptr.vmem [resolvable:$true] %s234
          %s236 = sshll.u32 %s233, 4
          %240 = dma.vmem_to_hbm [thread:$0]  (%p228), %s235, %s236, %s232, %s215, 32, 64, 2
        $region36: #{tpu_custom_call.1} parent=27 // pred_fallthru
          _
      $region28: #{tpu_custom_call.1} parent=5 // pred_fallthru
        _
      %p241 = scmp.le.s32.totalorder 2, %s14
      // Predicated region
      $region37: #{tpu_custom_call.1} parent=5 // pred_check
        %p242 = pneg %p241
      $region38: #{tpu_custom_call.1} parent=5 // pred_check_branch
        %244 = sbr.rel (%p242) target = $region40
      $region39: #{tpu_custom_call.1} parent=5 // pred_region
        %s245 = ssub.s32 %s14, 2
        // Predicated region
        $region41: #{tpu_custom_call.1} parent=39 // pred_check
          %p246 = pneg %p111
        $region42: #{tpu_custom_call.1} parent=39 // pred_check_branch
          %248 = sbr.rel (%p246) target = $region44
        $region43: #{tpu_custom_call.1} parent=39 // pred_region
          %s249 = sand.u32 %s96, 1
          %s250 = scalar_lea.sflag [#allocation4], %s249
          %s251 = sand.u32 %s96, 1
          %s252 = smul.addr %s251, 8
          %s253 = scalar_lea.vmem [#allocation5], %s252
          %254 = dma.done %s250, 128
        $region44: #{tpu_custom_call.1} parent=39 // pred_fallthru
          _
      $region40: #{tpu_custom_call.1} parent=5 // pred_fallthru
        _
    $region6: #{tpu_custom_call.1} parent=1 // loop_footer
      %s18 = sadd.s32 1, %s14
    $region7: #{tpu_custom_call.1} parent=1 // loop_footer_branch
      %13 = sbr.rel target = $region3
    $region8: #{tpu_custom_call.1} parent=1 // loop_exit
      _
    %255 = vsyncpa [#allocation3], 1
    %s256 = scalar_lea.sflag [#allocation3], 1
    %257 = vsyncpa %s256, 1
    %258 = vsyncpa [#allocation4], 1
    %s259 = scalar_lea.sflag [#allocation4], 1
    %260 = vsyncpa %s259, 1

</llo_original>
